<compile_context>
chip_gen: v7x
topology: tpu7x:2x2x1
jax: 0.10.0
libtpu: 0.0.40
codegen_flags: <defaults>
</compile_context>

<pallas_src>
import functools

import jax
import jax.numpy as jnp
from jax.experimental import pallas as pl
from jax.experimental.pallas import tpu as pltpu

PAD = 0          # s2s.Constants.PAD
CHUNK = 8        # tokens gathered per grid step; raise (128+) at real S*B


def _topic_encoder_kernel(ids_smem, ids_col_ref, table_hbm,
                          emb_ref, mask_ref,
                          row_buf, copy_sems, *, chunk, vocab):
    """One grid step = one chunk of `chunk` tokens.

    ids_smem    : (N_pad,) int32 SMEM (scalar prefetch) - drives the row DMAs.
    ids_col_ref : (chunk, 1) int32 VMEM block - vectorized pad-mask compare.
    table_hbm   : (V, D) HBM ref (pl.ANY) - never loaded wholesale into VMEM.
    emb_ref     : (chunk, D) VMEM output block (lane-dense store).
    mask_ref    : (chunk, 1) f32 VMEM output block (S*B row-major order).
    row_buf     : (chunk, D) VMEM scratch - DMA staging for the gathered rows.
    copy_sems   : (chunk,) DMA semaphores.
    """
    c = pl.program_id(0)
    base = c * chunk

    # Issue all row-gather DMAs up front so they overlap each other and the
    # mask compute below.  Clamp ids: nn.Embedding would raise on an
    # out-of-range index; we clamp so no OOB HBM DMA is ever issued.
    copies = []
    for j in range(chunk):                           # small static unroll
        tok = ids_smem[base + j]
        tok = jnp.minimum(jnp.maximum(tok, 0), vocab - 1)
        cp = pltpu.make_async_copy(
            table_hbm.at[pl.ds(tok, 1)],             # (1, D) table row in HBM
            row_buf.at[pl.ds(j, 1)],                 # staging row in VMEM
            copy_sems.at[j])
        cp.start()
        copies.append(cp)

    # Pad mask: (ids == PAD) as float, computed while the gathers are in flight.
    mask_ref[...] = (ids_col_ref[...] == PAD).astype(jnp.float32)

    # Drain the gathers, then one lane-dense (chunk, D) store into the
    # pipelined output block.
    for cp in copies:
        cp.wait()
    emb_ref[...] = row_buf[...]


def topic_encoder_forward(ids, emb_table, *, chunk=CHUNK):
    """Pallas forward of TopicEncoder.

    Args:
      ids:       (S, B) int32 token indices (PyTorch uses int64; int32 is TPU-native).
      emb_table: (V, D) float32 embedding weight; row PAD is zero, matching
                 nn.Embedding(padding_idx=PAD).  Forward-only.
    Returns:
      word_emb: (S, B, D) float32
      mask:     (B, S)    float32
    """
    S, B = ids.shape
    V, D = emb_table.shape
    N = S * B
    n_chunks = pl.cdiv(N, chunk)
    n_pad = n_chunks * chunk

    ids_flat = ids.reshape(N).astype(jnp.int32)
    if n_pad != N:
        # Padded slots gather the (zero) PAD row and are sliced off below.
        ids_flat = jnp.pad(ids_flat, (0, n_pad - N), constant_values=PAD)
    ids_col = ids_flat.reshape(n_pad, 1)             # row-major metadata reshape

    kernel = functools.partial(_topic_encoder_kernel, chunk=chunk, vocab=V)

    emb_flat, mask_col = pl.pallas_call(
        kernel,
        out_shape=(
            jax.ShapeDtypeStruct((n_pad, D), emb_table.dtype),
            jax.ShapeDtypeStruct((n_pad, 1), jnp.float32),
        ),
        grid_spec=pltpu.PrefetchScalarGridSpec(
            num_scalar_prefetch=1,                             # ids_flat -> SMEM
            grid=(n_chunks,),
            in_specs=[
                pl.BlockSpec((chunk, 1), lambda c, ids_sm: (c, 0)),   # ids column
                pl.BlockSpec(memory_space=pl.ANY),                    # table in HBM
            ],
            out_specs=(
                pl.BlockSpec((chunk, D), lambda c, ids_sm: (c, 0)),   # embeddings
                pl.BlockSpec((chunk, 1), lambda c, ids_sm: (c, 0)),   # mask (S*B order)
            ),
            scratch_shapes=[
                pltpu.VMEM((chunk, D), emb_table.dtype),              # DMA staging
                pltpu.SemaphoreType.DMA((chunk,)),
            ],
        ),
        compiler_params=pltpu.CompilerParams(
            dimension_semantics=("parallel",)),        # v7x: 2 TCs split the chunks
        cost_estimate=pl.CostEstimate(
            flops=0, transcendentals=0,
            bytes_accessed=n_pad * (2 * D * 4 + 3 * 4)),
    )(ids_flat, ids_col, emb_table)

    # Layout plumbing only: free row-major reshapes + tiny (S*B) mask transpose.
    word_emb = emb_flat[:N].reshape(S, B, D)
    mask = mask_col[:N, 0].reshape(S, B).T
    return word_emb, mask


if __name__ == "__main__":
    vocab_size = 512
    word_vec_size = 128      # multiple of 128 -> lane-dense embedding stores
    seq_len = 8
    batch = 4

    key = jax.random.PRNGKey(0)
    k_ids, k_emb = jax.random.split(key)

    ids = jax.random.randint(k_ids, (seq_len, batch), 0, vocab_size, dtype=jnp.int32)
    # Force some PAD tokens so the mask path is exercised.
    ids = ids.at[-2:, 1].set(PAD)
    ids = ids.at[-1, 3].set(PAD)

    emb_table = jax.random.normal(k_emb, (vocab_size, word_vec_size), dtype=jnp.float32)
    # nn.Embedding(padding_idx=PAD): PAD row is zero.
    emb_table = emb_table.at[PAD].set(0.0)

    word_emb, mask = topic_encoder_forward(ids, emb_table)
    word_emb = jax.block_until_ready(word_emb)
    mask = jax.block_until_ready(mask)

    # Pure-JAX reference of the PyTorch forward.
    ref_emb = emb_table[ids]                                # (S, B, D)
    ref_mask = (ids == PAD).astype(jnp.float32).T           # (B, S)

    assert word_emb.shape == (seq_len, batch, word_vec_size)
    assert mask.shape == (batch, seq_len)
    assert jnp.allclose(word_emb, ref_emb, atol=1e-6, rtol=1e-6)
    assert jnp.allclose(mask, ref_mask)

    print("KERNEL_OK")
</pallas_src>

<mosaic_0001>
module attributes {stable_mosaic.version = 11 : i64} {
  func.func @_topic_encoder_kernel(%arg0: i32, %arg1: memref<32xi32, #tpu.memory_space<smem>>, %arg2: memref<8x1xi32, #tpu.memory_space<vmem>>, %arg3: memref<512x128xf32, #tpu.memory_space<any>>, %arg4: memref<8x128xf32, #tpu.memory_space<vmem>>, %arg5: memref<8x1xf32, #tpu.memory_space<vmem>>, %arg6: memref<8x128xf32, #tpu.memory_space<vmem>>, %arg7: memref<8x!tpu.dma_semaphore, #tpu.memory_space<semaphore_mem>>) attributes {dimension_semantics = [#tpu.dimension_semantics<parallel>], iteration_bounds = array<i64: 4>, scalar_prefetch = 1 : i64, scratch_operands = 2 : i64, tpu.core_type = #tpu.core_type<tc>, window_params = [{transform_indices = @transform_0, window_bounds = array<i64: 8, 1>}, {}, {transform_indices = @transform_2, window_bounds = array<i64: 8, 128>}, {transform_indices = @transform_3, window_bounds = array<i64: 8, 1>}]} {
    %c8_i32 = arith.constant 8 : i32
    %0 = arith.muli %arg0, %c8_i32 : i32
    %c0_i32 = arith.constant 0 : i32
    %1 = arith.addi %0, %c0_i32 : i32
    %2 = arith.index_cast %1 : i32 to index
    %3 = memref.load %arg1[%2] : memref<32xi32, #tpu.memory_space<smem>>
    %c0_i32_0 = arith.constant 0 : i32
    %4 = arith.maxsi %3, %c0_i32_0 : i32
    %c511_i32 = arith.constant 511 : i32
    %5 = arith.minsi %4, %c511_i32 : i32
    %c0_i32_1 = arith.constant 0 : i32
    %c0_i32_2 = arith.constant 0 : i32
    %6 = tpu.memref_slice %arg3[%5, %c0_i32_2] : memref<512x128xf32, #tpu.memory_space<any>> -> memref<1x128xf32, #tpu.memory_space<any>>
    %c0_i32_3 = arith.constant 0 : i32
    %c0_i32_4 = arith.constant 0 : i32
    %7 = tpu.memref_slice %arg6[%c0_i32_3, %c0_i32_4] : memref<8x128xf32, #tpu.memory_space<vmem>> -> memref<1x128xf32, #tpu.memory_space<vmem>>
    %8 = tpu.memref_slice %arg7[%c0_i32_1] : memref<8x!tpu.dma_semaphore, #tpu.memory_space<semaphore_mem>> -> memref<1x!tpu.dma_semaphore, #tpu.memory_space<semaphore_mem>>
    %9 = tpu.memref_squeeze %8 : memref<1x!tpu.dma_semaphore, #tpu.memory_space<semaphore_mem>> -> memref<!tpu.dma_semaphore, #tpu.memory_space<semaphore_mem>>
    tpu.enqueue_dma source(%6 : memref<1x128xf32, #tpu.memory_space<any>>) target(%7 : memref<1x128xf32, #tpu.memory_space<vmem>>) target_semaphore(%9 : memref<!tpu.dma_semaphore, #tpu.memory_space<semaphore_mem>>)
    %c1_i32 = arith.constant 1 : i32
    %10 = arith.addi %0, %c1_i32 : i32
    %11 = arith.index_cast %10 : i32 to index
    %12 = memref.load %arg1[%11] : memref<32xi32, #tpu.memory_space<smem>>
    %c0_i32_5 = arith.constant 0 : i32
    %13 = arith.maxsi %12, %c0_i32_5 : i32
    %c511_i32_6 = arith.constant 511 : i32
    %14 = arith.minsi %13, %c511_i32_6 : i32
    %c1_i32_7 = arith.constant 1 : i32
    %c0_i32_8 = arith.constant 0 : i32
    %15 = tpu.memref_slice %arg3[%14, %c0_i32_8] : memref<512x128xf32, #tpu.memory_space<any>> -> memref<1x128xf32, #tpu.memory_space<any>>
    %c1_i32_9 = arith.constant 1 : i32
    %c0_i32_10 = arith.constant 0 : i32
    %16 = tpu.memref_slice %arg6[%c1_i32_9, %c0_i32_10] : memref<8x128xf32, #tpu.memory_space<vmem>> -> memref<1x128xf32, #tpu.memory_space<vmem>>
    %17 = tpu.memref_slice %arg7[%c1_i32_7] : memref<8x!tpu.dma_semaphore, #tpu.memory_space<semaphore_mem>> -> memref<1x!tpu.dma_semaphore, #tpu.memory_space<semaphore_mem>>
    %18 = tpu.memref_squeeze %17 : memref<1x!tpu.dma_semaphore, #tpu.memory_space<semaphore_mem>> -> memref<!tpu.dma_semaphore, #tpu.memory_space<semaphore_mem>>
    tpu.enqueue_dma source(%15 : memref<1x128xf32, #tpu.memory_space<any>>) target(%16 : memref<1x128xf32, #tpu.memory_space<vmem>>) target_semaphore(%18 : memref<!tpu.dma_semaphore, #tpu.memory_space<semaphore_mem>>)
    %c2_i32 = arith.constant 2 : i32
    %19 = arith.addi %0, %c2_i32 : i32
    %20 = arith.index_cast %19 : i32 to index
    %21 = memref.load %arg1[%20] : memref<32xi32, #tpu.memory_space<smem>>
    %c0_i32_11 = arith.constant 0 : i32
    %22 = arith.maxsi %21, %c0_i32_11 : i32
    %c511_i32_12 = arith.constant 511 : i32
    %23 = arith.minsi %22, %c511_i32_12 : i32
    %c2_i32_13 = arith.constant 2 : i32
    %c0_i32_14 = arith.constant 0 : i32
    %24 = tpu.memref_slice %arg3[%23, %c0_i32_14] : memref<512x128xf32, #tpu.memory_space<any>> -> memref<1x128xf32, #tpu.memory_space<any>>
    %c2_i32_15 = arith.constant 2 : i32
    %c0_i32_16 = arith.constant 0 : i32
    %25 = tpu.memref_slice %arg6[%c2_i32_15, %c0_i32_16] : memref<8x128xf32, #tpu.memory_space<vmem>> -> memref<1x128xf32, #tpu.memory_space<vmem>>
    %26 = tpu.memref_slice %arg7[%c2_i32_13] : memref<8x!tpu.dma_semaphore, #tpu.memory_space<semaphore_mem>> -> memref<1x!tpu.dma_semaphore, #tpu.memory_space<semaphore_mem>>
    %27 = tpu.memref_squeeze %26 : memref<1x!tpu.dma_semaphore, #tpu.memory_space<semaphore_mem>> -> memref<!tpu.dma_semaphore, #tpu.memory_space<semaphore_mem>>
    tpu.enqueue_dma source(%24 : memref<1x128xf32, #tpu.memory_space<any>>) target(%25 : memref<1x128xf32, #tpu.memory_space<vmem>>) target_semaphore(%27 : memref<!tpu.dma_semaphore, #tpu.memory_space<semaphore_mem>>)
    %c3_i32 = arith.constant 3 : i32
    %28 = arith.addi %0, %c3_i32 : i32
    %29 = arith.index_cast %28 : i32 to index
    %30 = memref.load %arg1[%29] : memref<32xi32, #tpu.memory_space<smem>>
    %c0_i32_17 = arith.constant 0 : i32
    %31 = arith.maxsi %30, %c0_i32_17 : i32
    %c511_i32_18 = arith.constant 511 : i32
    %32 = arith.minsi %31, %c511_i32_18 : i32
    %c3_i32_19 = arith.constant 3 : i32
    %c0_i32_20 = arith.constant 0 : i32
    %33 = tpu.memref_slice %arg3[%32, %c0_i32_20] : memref<512x128xf32, #tpu.memory_space<any>> -> memref<1x128xf32, #tpu.memory_space<any>>
    %c3_i32_21 = arith.constant 3 : i32
    %c0_i32_22 = arith.constant 0 : i32
    %34 = tpu.memref_slice %arg6[%c3_i32_21, %c0_i32_22] : memref<8x128xf32, #tpu.memory_space<vmem>> -> memref<1x128xf32, #tpu.memory_space<vmem>>
    %35 = tpu.memref_slice %arg7[%c3_i32_19] : memref<8x!tpu.dma_semaphore, #tpu.memory_space<semaphore_mem>> -> memref<1x!tpu.dma_semaphore, #tpu.memory_space<semaphore_mem>>
    %36 = tpu.memref_squeeze %35 : memref<1x!tpu.dma_semaphore, #tpu.memory_space<semaphore_mem>> -> memref<!tpu.dma_semaphore, #tpu.memory_space<semaphore_mem>>
    tpu.enqueue_dma source(%33 : memref<1x128xf32, #tpu.memory_space<any>>) target(%34 : memref<1x128xf32, #tpu.memory_space<vmem>>) target_semaphore(%36 : memref<!tpu.dma_semaphore, #tpu.memory_space<semaphore_mem>>)
    %c4_i32 = arith.constant 4 : i32
    %37 = arith.addi %0, %c4_i32 : i32
    %38 = arith.index_cast %37 : i32 to index
    %39 = memref.load %arg1[%38] : memref<32xi32, #tpu.memory_space<smem>>
    %c0_i32_23 = arith.constant 0 : i32
    %40 = arith.maxsi %39, %c0_i32_23 : i32
    %c511_i32_24 = arith.constant 511 : i32
    %41 = arith.minsi %40, %c511_i32_24 : i32
    %c4_i32_25 = arith.constant 4 : i32
    %c0_i32_26 = arith.constant 0 : i32
    %42 = tpu.memref_slice %arg3[%41, %c0_i32_26] : memref<512x128xf32, #tpu.memory_space<any>> -> memref<1x128xf32, #tpu.memory_space<any>>
    %c4_i32_27 = arith.constant 4 : i32
    %c0_i32_28 = arith.constant 0 : i32
    %43 = tpu.memref_slice %arg6[%c4_i32_27, %c0_i32_28] : memref<8x128xf32, #tpu.memory_space<vmem>> -> memref<1x128xf32, #tpu.memory_space<vmem>>
    %44 = tpu.memref_slice %arg7[%c4_i32_25] : memref<8x!tpu.dma_semaphore, #tpu.memory_space<semaphore_mem>> -> memref<1x!tpu.dma_semaphore, #tpu.memory_space<semaphore_mem>>
    %45 = tpu.memref_squeeze %44 : memref<1x!tpu.dma_semaphore, #tpu.memory_space<semaphore_mem>> -> memref<!tpu.dma_semaphore, #tpu.memory_space<semaphore_mem>>
    tpu.enqueue_dma source(%42 : memref<1x128xf32, #tpu.memory_space<any>>) target(%43 : memref<1x128xf32, #tpu.memory_space<vmem>>) target_semaphore(%45 : memref<!tpu.dma_semaphore, #tpu.memory_space<semaphore_mem>>)
    %c5_i32 = arith.constant 5 : i32
    %46 = arith.addi %0, %c5_i32 : i32
    %47 = arith.index_cast %46 : i32 to index
    %48 = memref.load %arg1[%47] : memref<32xi32, #tpu.memory_space<smem>>
    %c0_i32_29 = arith.constant 0 : i32
    %49 = arith.maxsi %48, %c0_i32_29 : i32
    %c511_i32_30 = arith.constant 511 : i32
    %50 = arith.minsi %49, %c511_i32_30 : i32
    %c5_i32_31 = arith.constant 5 : i32
    %c0_i32_32 = arith.constant 0 : i32
    %51 = tpu.memref_slice %arg3[%50, %c0_i32_32] : memref<512x128xf32, #tpu.memory_space<any>> -> memref<1x128xf32, #tpu.memory_space<any>>
    %c5_i32_33 = arith.constant 5 : i32
    %c0_i32_34 = arith.constant 0 : i32
    %52 = tpu.memref_slice %arg6[%c5_i32_33, %c0_i32_34] : memref<8x128xf32, #tpu.memory_space<vmem>> -> memref<1x128xf32, #tpu.memory_space<vmem>>
    %53 = tpu.memref_slice %arg7[%c5_i32_31] : memref<8x!tpu.dma_semaphore, #tpu.memory_space<semaphore_mem>> -> memref<1x!tpu.dma_semaphore, #tpu.memory_space<semaphore_mem>>
    %54 = tpu.memref_squeeze %53 : memref<1x!tpu.dma_semaphore, #tpu.memory_space<semaphore_mem>> -> memref<!tpu.dma_semaphore, #tpu.memory_space<semaphore_mem>>
    tpu.enqueue_dma source(%51 : memref<1x128xf32, #tpu.memory_space<any>>) target(%52 : memref<1x128xf32, #tpu.memory_space<vmem>>) target_semaphore(%54 : memref<!tpu.dma_semaphore, #tpu.memory_space<semaphore_mem>>)
    %c6_i32 = arith.constant 6 : i32
    %55 = arith.addi %0, %c6_i32 : i32
    %56 = arith.index_cast %55 : i32 to index
    %57 = memref.load %arg1[%56] : memref<32xi32, #tpu.memory_space<smem>>
    %c0_i32_35 = arith.constant 0 : i32
    %58 = arith.maxsi %57, %c0_i32_35 : i32
    %c511_i32_36 = arith.constant 511 : i32
    %59 = arith.minsi %58, %c511_i32_36 : i32
    %c6_i32_37 = arith.constant 6 : i32
    %c0_i32_38 = arith.constant 0 : i32
    %60 = tpu.memref_slice %arg3[%59, %c0_i32_38] : memref<512x128xf32, #tpu.memory_space<any>> -> memref<1x128xf32, #tpu.memory_space<any>>
    %c6_i32_39 = arith.constant 6 : i32
    %c0_i32_40 = arith.constant 0 : i32
    %61 = tpu.memref_slice %arg6[%c6_i32_39, %c0_i32_40] : memref<8x128xf32, #tpu.memory_space<vmem>> -> memref<1x128xf32, #tpu.memory_space<vmem>>
    %62 = tpu.memref_slice %arg7[%c6_i32_37] : memref<8x!tpu.dma_semaphore, #tpu.memory_space<semaphore_mem>> -> memref<1x!tpu.dma_semaphore, #tpu.memory_space<semaphore_mem>>
    %63 = tpu.memref_squeeze %62 : memref<1x!tpu.dma_semaphore, #tpu.memory_space<semaphore_mem>> -> memref<!tpu.dma_semaphore, #tpu.memory_space<semaphore_mem>>
    tpu.enqueue_dma source(%60 : memref<1x128xf32, #tpu.memory_space<any>>) target(%61 : memref<1x128xf32, #tpu.memory_space<vmem>>) target_semaphore(%63 : memref<!tpu.dma_semaphore, #tpu.memory_space<semaphore_mem>>)
    %c7_i32 = arith.constant 7 : i32
    %64 = arith.addi %0, %c7_i32 : i32
    %65 = arith.index_cast %64 : i32 to index
    %66 = memref.load %arg1[%65] : memref<32xi32, #tpu.memory_space<smem>>
    %c0_i32_41 = arith.constant 0 : i32
    %67 = arith.maxsi %66, %c0_i32_41 : i32
    %c511_i32_42 = arith.constant 511 : i32
    %68 = arith.minsi %67, %c511_i32_42 : i32
    %c7_i32_43 = arith.constant 7 : i32
    %c0_i32_44 = arith.constant 0 : i32
    %69 = tpu.memref_slice %arg3[%68, %c0_i32_44] : memref<512x128xf32, #tpu.memory_space<any>> -> memref<1x128xf32, #tpu.memory_space<any>>
    %c7_i32_45 = arith.constant 7 : i32
    %c0_i32_46 = arith.constant 0 : i32
    %70 = tpu.memref_slice %arg6[%c7_i32_45, %c0_i32_46] : memref<8x128xf32, #tpu.memory_space<vmem>> -> memref<1x128xf32, #tpu.memory_space<vmem>>
    %71 = tpu.memref_slice %arg7[%c7_i32_43] : memref<8x!tpu.dma_semaphore, #tpu.memory_space<semaphore_mem>> -> memref<1x!tpu.dma_semaphore, #tpu.memory_space<semaphore_mem>>
    %72 = tpu.memref_squeeze %71 : memref<1x!tpu.dma_semaphore, #tpu.memory_space<semaphore_mem>> -> memref<!tpu.dma_semaphore, #tpu.memory_space<semaphore_mem>>
    tpu.enqueue_dma source(%69 : memref<1x128xf32, #tpu.memory_space<any>>) target(%70 : memref<1x128xf32, #tpu.memory_space<vmem>>) target_semaphore(%72 : memref<!tpu.dma_semaphore, #tpu.memory_space<semaphore_mem>>)
    %c0 = arith.constant 0 : index
    %c0_47 = arith.constant 0 : index
    %73 = vector.load %arg2[%c0, %c0_47] : memref<8x1xi32, #tpu.memory_space<vmem>>, vector<8x1xi32>
    %c0_i32_48 = arith.constant 0 : i32
    %74 = vector.broadcast %c0_i32_48 : i32 to vector<8x1xi32>
    %75 = arith.cmpi eq, %73, %74 : vector<8x1xi32>
    %76 = arith.extui %75 : vector<8x1xi1> to vector<8x1xi32>
    %77 = arith.sitofp %76 : vector<8x1xi32> to vector<8x1xf32>
    %c0_49 = arith.constant 0 : index
    %c0_50 = arith.constant 0 : index
    %78 = vector.load %arg5[%c0_49, %c0_50] : memref<8x1xf32, #tpu.memory_space<vmem>>, vector<8x1xf32>
    tpu.vector_store %arg5[%c0_49, %c0_50], %77 {strides = array<i32>} : memref<8x1xf32, #tpu.memory_space<vmem>>, vector<8x1xf32>,
    %c0_i32_51 = arith.constant 0 : i32
    %c0_i32_52 = arith.constant 0 : i32
    %79 = tpu.memref_slice %arg3[%5, %c0_i32_52] : memref<512x128xf32, #tpu.memory_space<any>> -> memref<1x128xf32, #tpu.memory_space<any>>
    %c0_i32_53 = arith.constant 0 : i32
    %c0_i32_54 = arith.constant 0 : i32
    %80 = tpu.memref_slice %arg6[%c0_i32_53, %c0_i32_54] : memref<8x128xf32, #tpu.memory_space<vmem>> -> memref<1x128xf32, #tpu.memory_space<vmem>>
    %81 = tpu.memref_slice %arg7[%c0_i32_51] : memref<8x!tpu.dma_semaphore, #tpu.memory_space<semaphore_mem>> -> memref<1x!tpu.dma_semaphore, #tpu.memory_space<semaphore_mem>>
    %82 = tpu.memref_squeeze %81 : memref<1x!tpu.dma_semaphore, #tpu.memory_space<semaphore_mem>> -> memref<!tpu.dma_semaphore, #tpu.memory_space<semaphore_mem>>
    tpu.wait_dma2 semaphore(%82 : memref<!tpu.dma_semaphore, #tpu.memory_space<semaphore_mem>>) src(%79 : memref<1x128xf32, #tpu.memory_space<any>>) dst(%80 : memref<1x128xf32, #tpu.memory_space<vmem>>)
    %c1_i32_55 = arith.constant 1 : i32
    %c0_i32_56 = arith.constant 0 : i32
    %83 = tpu.memref_slice %arg3[%14, %c0_i32_56] : memref<512x128xf32, #tpu.memory_space<any>> -> memref<1x128xf32, #tpu.memory_space<any>>
    %c1_i32_57 = arith.constant 1 : i32
    %c0_i32_58 = arith.constant 0 : i32
    %84 = tpu.memref_slice %arg6[%c1_i32_57, %c0_i32_58] : memref<8x128xf32, #tpu.memory_space<vmem>> -> memref<1x128xf32, #tpu.memory_space<vmem>>
    %85 = tpu.memref_slice %arg7[%c1_i32_55] : memref<8x!tpu.dma_semaphore, #tpu.memory_space<semaphore_mem>> -> memref<1x!tpu.dma_semaphore, #tpu.memory_space<semaphore_mem>>
    %86 = tpu.memref_squeeze %85 : memref<1x!tpu.dma_semaphore, #tpu.memory_space<semaphore_mem>> -> memref<!tpu.dma_semaphore, #tpu.memory_space<semaphore_mem>>
    tpu.wait_dma2 semaphore(%86 : memref<!tpu.dma_semaphore, #tpu.memory_space<semaphore_mem>>) src(%83 : memref<1x128xf32, #tpu.memory_space<any>>) dst(%84 : memref<1x128xf32, #tpu.memory_space<vmem>>)
    %c2_i32_59 = arith.constant 2 : i32
    %c0_i32_60 = arith.constant 0 : i32
    %87 = tpu.memref_slice %arg3[%23, %c0_i32_60] : memref<512x128xf32, #tpu.memory_space<any>> -> memref<1x128xf32, #tpu.memory_space<any>>
    %c2_i32_61 = arith.constant 2 : i32
    %c0_i32_62 = arith.constant 0 : i32
    %88 = tpu.memref_slice %arg6[%c2_i32_61, %c0_i32_62] : memref<8x128xf32, #tpu.memory_space<vmem>> -> memref<1x128xf32, #tpu.memory_space<vmem>>
    %89 = tpu.memref_slice %arg7[%c2_i32_59] : memref<8x!tpu.dma_semaphore, #tpu.memory_space<semaphore_mem>> -> memref<1x!tpu.dma_semaphore, #tpu.memory_space<semaphore_mem>>
    %90 = tpu.memref_squeeze %89 : memref<1x!tpu.dma_semaphore, #tpu.memory_space<semaphore_mem>> -> memref<!tpu.dma_semaphore, #tpu.memory_space<semaphore_mem>>
    tpu.wait_dma2 semaphore(%90 : memref<!tpu.dma_semaphore, #tpu.memory_space<semaphore_mem>>) src(%87 : memref<1x128xf32, #tpu.memory_space<any>>) dst(%88 : memref<1x128xf32, #tpu.memory_space<vmem>>)
    %c3_i32_63 = arith.constant 3 : i32
    %c0_i32_64 = arith.constant 0 : i32
    %91 = tpu.memref_slice %arg3[%32, %c0_i32_64] : memref<512x128xf32, #tpu.memory_space<any>> -> memref<1x128xf32, #tpu.memory_space<any>>
    %c3_i32_65 = arith.constant 3 : i32
    %c0_i32_66 = arith.constant 0 : i32
    %92 = tpu.memref_slice %arg6[%c3_i32_65, %c0_i32_66] : memref<8x128xf32, #tpu.memory_space<vmem>> -> memref<1x128xf32, #tpu.memory_space<vmem>>
    %93 = tpu.memref_slice %arg7[%c3_i32_63] : memref<8x!tpu.dma_semaphore, #tpu.memory_space<semaphore_mem>> -> memref<1x!tpu.dma_semaphore, #tpu.memory_space<semaphore_mem>>
    %94 = tpu.memref_squeeze %93 : memref<1x!tpu.dma_semaphore, #tpu.memory_space<semaphore_mem>> -> memref<!tpu.dma_semaphore, #tpu.memory_space<semaphore_mem>>
    tpu.wait_dma2 semaphore(%94 : memref<!tpu.dma_semaphore, #tpu.memory_space<semaphore_mem>>) src(%91 : memref<1x128xf32, #tpu.memory_space<any>>) dst(%92 : memref<1x128xf32, #tpu.memory_space<vmem>>)
    %c4_i32_67 = arith.constant 4 : i32
    %c0_i32_68 = arith.constant 0 : i32
    %95 = tpu.memref_slice %arg3[%41, %c0_i32_68] : memref<512x128xf32, #tpu.memory_space<any>> -> memref<1x128xf32, #tpu.memory_space<any>>
    %c4_i32_69 = arith.constant 4 : i32
    %c0_i32_70 = arith.constant 0 : i32
    %96 = tpu.memref_slice %arg6[%c4_i32_69, %c0_i32_70] : memref<8x128xf32, #tpu.memory_space<vmem>> -> memref<1x128xf32, #tpu.memory_space<vmem>>
    %97 = tpu.memref_slice %arg7[%c4_i32_67] : memref<8x!tpu.dma_semaphore, #tpu.memory_space<semaphore_mem>> -> memref<1x!tpu.dma_semaphore, #tpu.memory_space<semaphore_mem>>
    %98 = tpu.memref_squeeze %97 : memref<1x!tpu.dma_semaphore, #tpu.memory_space<semaphore_mem>> -> memref<!tpu.dma_semaphore, #tpu.memory_space<semaphore_mem>>
    tpu.wait_dma2 semaphore(%98 : memref<!tpu.dma_semaphore, #tpu.memory_space<semaphore_mem>>) src(%95 : memref<1x128xf32, #tpu.memory_space<any>>) dst(%96 : memref<1x128xf32, #tpu.memory_space<vmem>>)
    %c5_i32_71 = arith.constant 5 : i32
    %c0_i32_72 = arith.constant 0 : i32
    %99 = tpu.memref_slice %arg3[%50, %c0_i32_72] : memref<512x128xf32, #tpu.memory_space<any>> -> memref<1x128xf32, #tpu.memory_space<any>>
    %c5_i32_73 = arith.constant 5 : i32
    %c0_i32_74 = arith.constant 0 : i32
    %100 = tpu.memref_slice %arg6[%c5_i32_73, %c0_i32_74] : memref<8x128xf32, #tpu.memory_space<vmem>> -> memref<1x128xf32, #tpu.memory_space<vmem>>
    %101 = tpu.memref_slice %arg7[%c5_i32_71] : memref<8x!tpu.dma_semaphore, #tpu.memory_space<semaphore_mem>> -> memref<1x!tpu.dma_semaphore, #tpu.memory_space<semaphore_mem>>
    %102 = tpu.memref_squeeze %101 : memref<1x!tpu.dma_semaphore, #tpu.memory_space<semaphore_mem>> -> memref<!tpu.dma_semaphore, #tpu.memory_space<semaphore_mem>>
    tpu.wait_dma2 semaphore(%102 : memref<!tpu.dma_semaphore, #tpu.memory_space<semaphore_mem>>) src(%99 : memref<1x128xf32, #tpu.memory_space<any>>) dst(%100 : memref<1x128xf32, #tpu.memory_space<vmem>>)
    %c6_i32_75 = arith.constant 6 : i32
    %c0_i32_76 = arith.constant 0 : i32
    %103 = tpu.memref_slice %arg3[%59, %c0_i32_76] : memref<512x128xf32, #tpu.memory_space<any>> -> memref<1x128xf32, #tpu.memory_space<any>>
    %c6_i32_77 = arith.constant 6 : i32
    %c0_i32_78 = arith.constant 0 : i32
    %104 = tpu.memref_slice %arg6[%c6_i32_77, %c0_i32_78] : memref<8x128xf32, #tpu.memory_space<vmem>> -> memref<1x128xf32, #tpu.memory_space<vmem>>
    %105 = tpu.memref_slice %arg7[%c6_i32_75] : memref<8x!tpu.dma_semaphore, #tpu.memory_space<semaphore_mem>> -> memref<1x!tpu.dma_semaphore, #tpu.memory_space<semaphore_mem>>
    %106 = tpu.memref_squeeze %105 : memref<1x!tpu.dma_semaphore, #tpu.memory_space<semaphore_mem>> -> memref<!tpu.dma_semaphore, #tpu.memory_space<semaphore_mem>>
    tpu.wait_dma2 semaphore(%106 : memref<!tpu.dma_semaphore, #tpu.memory_space<semaphore_mem>>) src(%103 : memref<1x128xf32, #tpu.memory_space<any>>) dst(%104 : memref<1x128xf32, #tpu.memory_space<vmem>>)
    %c7_i32_79 = arith.constant 7 : i32
    %c0_i32_80 = arith.constant 0 : i32
    %107 = tpu.memref_slice %arg3[%68, %c0_i32_80] : memref<512x128xf32, #tpu.memory_space<any>> -> memref<1x128xf32, #tpu.memory_space<any>>
    %c7_i32_81 = arith.constant 7 : i32
    %c0_i32_82 = arith.constant 0 : i32
    %108 = tpu.memref_slice %arg6[%c7_i32_81, %c0_i32_82] : memref<8x128xf32, #tpu.memory_space<vmem>> -> memref<1x128xf32, #tpu.memory_space<vmem>>
    %109 = tpu.memref_slice %arg7[%c7_i32_79] : memref<8x!tpu.dma_semaphore, #tpu.memory_space<semaphore_mem>> -> memref<1x!tpu.dma_semaphore, #tpu.memory_space<semaphore_mem>>
    %110 = tpu.memref_squeeze %109 : memref<1x!tpu.dma_semaphore, #tpu.memory_space<semaphore_mem>> -> memref<!tpu.dma_semaphore, #tpu.memory_space<semaphore_mem>>
    tpu.wait_dma2 semaphore(%110 : memref<!tpu.dma_semaphore, #tpu.memory_space<semaphore_mem>>) src(%107 : memref<1x128xf32, #tpu.memory_space<any>>) dst(%108 : memref<1x128xf32, #tpu.memory_space<vmem>>)
    %c0_83 = arith.constant 0 : index
    %c0_84 = arith.constant 0 : index
    %111 = vector.load %arg6[%c0_83, %c0_84] : memref<8x128xf32, #tpu.memory_space<vmem>>, vector<8x128xf32>
    %c0_85 = arith.constant 0 : index
    %c0_86 = arith.constant 0 : index
    %112 = vector.load %arg4[%c0_85, %c0_86] : memref<8x128xf32, #tpu.memory_space<vmem>>, vector<8x128xf32>
    tpu.vector_store %arg4[%c0_85, %c0_86], %111 {strides = array<i32>} : memref<8x128xf32, #tpu.memory_space<vmem>>, vector<8x128xf32>,
    return
  }
  func.func @transform_0(%arg0: i32, %arg1: memref<32xi32, #tpu.memory_space<smem>>) -> (i32, i32) {
    %c0_i32 = arith.constant 0 : i32
    %c0_i32_0 = arith.constant 0 : i32
    return %arg0, %c0_i32 : i32, i32
  }
  func.func @transform_2(%arg0: i32, %arg1: memref<32xi32, #tpu.memory_space<smem>>) -> (i32, i32) {
    %c0_i32 = arith.constant 0 : i32
    %c0_i32_0 = arith.constant 0 : i32
    return %arg0, %c0_i32 : i32, i32
  }
  func.func @transform_3(%arg0: i32, %arg1: memref<32xi32, #tpu.memory_space<smem>>) -> (i32, i32) {
    %c0_i32 = arith.constant 0 : i32
    %c0_i32_0 = arith.constant 0 : i32
    return %arg0, %c0_i32 : i32, i32
  }
}

</mosaic_0001>

<llo_original>
// kernel: tpu_custom_call.1
$region0: #{tpu_custom_call.1}
  #allocation0 [shape = 'u32[]', space=smem, size = 0x4, offset = 0x4, fixed_abs, tag = 'smem constant byte address 0x4 - core index']
  #allocation1 [shape = 'u32[144,128]{1,0:T(1,128)}', space=vmem, size = 0x12000, scoped, tag = 'internal scratch']
  #allocation2 [shape = 'f32[8,128]{1,0:T(8,128)}', space=vmem, size = 0x1000, scoped, tag = 'scratch operand']
  #allocation3 [shape = 's32[8]{0}', space=sflag, size = 0x20, scoped, tag = 'scratch operand']
  #allocation4 [shape = 's32[1]{0}', space=sflag, size = 0x4, scoped, tag = 'scoped memory for tpu_custom_call.1']
  #allocation5 [shape = 'u8[512]{0}', space=smem, size = 0x200, scoped, tag = 'prefetched SMEM operand 0']
  #allocation8 [shape = 's32[]', space=sflag, size = 0x4, offset = 0, fixed_abs, tag = 'sflag constant byte address 0x0 - dummy sync flag']
  #allocation9 [shape = 's32[]', space=sflag, size = 0x4, offset = 0, fixed_abs, tag = 'sflag constant byte address 0x0 - dummy sync flag']
  #allocation10 [shape = 'u32[]', space=smem, size = 0x4, offset = 0x44, fixed_abs, tag = 'smem constant byte address 0x44 - assertion arg 0']
  #allocation11 [shape = 'u32[]', space=smem, size = 0x4, offset = 0x48, fixed_abs, tag = 'smem constant byte address 0x48 - assertion arg 1']
  #allocation12 [shape = 's32[]', space=sflag, size = 0x4, offset = 0, fixed_abs, tag = 'sflag constant byte address 0x0 - dummy sync flag']
  #allocation13 [shape = 's32[]', space=sflag, size = 0x4, offset = 0, fixed_abs, tag = 'sflag constant byte address 0x0 - dummy sync flag']
  #allocation14 [shape = 's32[]', space=sflag, size = 0x4, offset = 0, fixed_abs, tag = 'sflag constant byte address 0x0 - dummy sync flag']
  #allocation15 [shape = 's32[]', space=sflag, size = 0x4, offset = 0, fixed_abs, tag = 'sflag constant byte address 0x0 - dummy sync flag']
  #allocation16 [shape = 's32[]', space=sflag, size = 0x4, offset = 0, fixed_abs, tag = 'sflag constant byte address 0x0 - dummy sync flag']
  #allocation17 [shape = 's32[]', space=sflag, size = 0x4, offset = 0, fixed_abs, tag = 'sflag constant byte address 0x0 - dummy sync flag']
  #allocation18 [shape = 's32[]', space=sflag, size = 0x4, offset = 0, fixed_abs, tag = 'sflag constant byte address 0x0 - dummy sync flag']
  #allocation19 [shape = 's32[]', space=sflag, size = 0x4, offset = 0, fixed_abs, tag = 'sflag constant byte address 0x0 - dummy sync flag']
  #allocation20 [shape = 's32[]', space=sflag, size = 0x4, offset = 0, fixed_abs, tag = 'sflag constant byte address 0x0 - dummy sync flag']
  #allocation21 [shape = 's32[]', space=sflag, size = 0x4, offset = 0, fixed_abs, tag = 'sflag constant byte address 0x0 - dummy sync flag']
  #allocation22 [shape = 's32[]', space=sflag, size = 0x4, offset = 0, fixed_abs, tag = 'sflag constant byte address 0x0 - dummy sync flag']
  #allocation23 [shape = 's32[]', space=sflag, size = 0x4, offset = 0, fixed_abs, tag = 'sflag constant byte address 0x0 - dummy sync flag']
  #allocation24 [shape = 's32[]', space=sflag, size = 0x4, offset = 0, fixed_abs, tag = 'sflag constant byte address 0x0 - dummy sync flag']
  #allocation25 [shape = 's32[]', space=sflag, size = 0x4, offset = 0, fixed_abs, tag = 'sflag constant byte address 0x0 - dummy sync flag']
  %s0 = inlined_call_operand.vmem [shape: s32[32], index: 0, kind: input, shape index: {}]
  %s1 = inlined_call_operand.vmem [shape: s32[32,1], index: 1, kind: input, shape index: {}]
  %s2 = inlined_call_operand.hbm [shape: f32[512,128], index: 2, kind: input, shape index: {}]
  %s3 = inlined_call_operand.hbm [shape: f32[32,128], index: 3, kind: output, shape index: {0}]
  %s4 = inlined_call_operand.vmem [shape: f32[32,1], index: 4, kind: output, shape index: {1}]
  %5 = xla_tuple %s3, %s4
  %s6 = sld [smem:[#allocation0]]
  $region77: #{tpu_custom_call.1} parent=0
    _
  %s8 = ssub.s32 1, %s6
  %s9 = scalar_select 0, %s8, %s6
  %s10 = sshll.u32 %s0, 4
  %s11 = int_to_ptr.vmem [resolvable:$true] %s10
  %13 = dma.vmem_to_smem %s11, 16, [#allocation5], [#allocation4]
  %14 = dma.done [#allocation4], 16
  %15 = sfence
  $region1: #{tpu_custom_call.1} parent=0
    #allocation6 [shape = 'u8[8192]{0}', space=vmem, size = 0x2000, scoped, tag = 'output window, operand 0']
    #allocation7 [shape = 's32[2]{0}', space=sflag, size = 0x8, scoped, tag = 'scoped memory for tpu_custom_call.1']
    %16 = vsyncpa [#allocation7], 0
    %s17 = scalar_lea.sflag [#allocation7], 1
    %18 = vsyncpa %s17, 0
    loop: start=0, step=1, limit=6
    $region2: #{tpu_custom_call.1} parent=1 // loop_pre_header
      _
    $region3: #{tpu_custom_call.1} parent=1 // loop_header
      %s20 = sphi 0, %s24
      %p21 = scmp.ge.s32.totalorder %s20, 6
      %s30 = sphi 0, %s32
      %s33 = sphi 0, %s30
      %s34 = sphi 0, %s33
      %s50 = sphi 0, %s34
      %s56 = sphi 0, %s58
      %s59 = sphi 0, %s56
      %s60 = sphi 0, %s59
      %s76 = sphi 0, %s60
      %s82 = sphi 0, %s84
      %s85 = sphi 0, %s82
      %s86 = sphi 0, %s85
      %s102 = sphi 0, %s86
    $region4: #{tpu_custom_call.1} parent=1 // loop_header_branch
      %23 = sbr.rel (%p21) target = $region8
    $region5: #{tpu_custom_call.1} parent=1 // loop_body
      %s25 = ssub.s32 %s20, 1
      %s26 = ssub.s32 %s20, 2
      %s27 = sadd.s32 %s20, 1
      %s28 = ssub.s32 %s20, %s27
      %p29 = scmp.eq.s32.totalorder %s28, 0
      %s31 = sadd.s32 %s30, 1
      %s32 = scalar_select %p29, %s30, %s31
      %p35 = pneg %p29
      %p36 = scmp.eq.s32.totalorder %s20, 3
      %p37 = por %p35, %p36
      %p38 = scmp.ne.s32.totalorder %s30, %s33
      %p39 = scmp.eq.s32.totalorder %s20, 0
      %p40 = por %p38, %p39
      %p41 = scmp.ne.s32.totalorder %s30, %s33
      %p42 = scmp.eq.s32.totalorder %s25, 3
      %p43 = por %p41, %p42
      %p44 = scmp.ne.s32.totalorder %s33, %s34
      %p45 = scmp.eq.s32.totalorder %s25, 0
      %p46 = por %p44, %p45
      %p47 = scmp.ne.s32.totalorder %s33, %s34
      %p48 = scmp.eq.s32.totalorder %s26, 3
      %p49 = por %p47, %p48
      %p51 = scmp.ne.s32.totalorder %s34, %s50
      %p52 = scmp.eq.s32.totalorder %s26, 0
      %p53 = por %p51, %p52
      %s54 = ssub.s32 %s20, %s27
      %p55 = scmp.eq.s32.totalorder %s54, 0
      %s57 = sadd.s32 %s56, 1
      %s58 = scalar_select %p55, %s56, %s57
      %p61 = pneg %p55
      %p62 = scmp.eq.s32.totalorder %s20, 3
      %p63 = por %p61, %p62
      %p64 = scmp.ne.s32.totalorder %s56, %s59
      %p65 = scmp.eq.s32.totalorder %s20, 0
      %p66 = por %p64, %p65
      %p67 = scmp.ne.s32.totalorder %s56, %s59
      %p68 = scmp.eq.s32.totalorder %s25, 3
      %p69 = por %p67, %p68
      %p70 = scmp.ne.s32.totalorder %s59, %s60
      %p71 = scmp.eq.s32.totalorder %s25, 0
      %p72 = por %p70, %p71
      %p73 = scmp.ne.s32.totalorder %s59, %s60
      %p74 = scmp.eq.s32.totalorder %s26, 3
      %p75 = por %p73, %p74
      %p77 = scmp.ne.s32.totalorder %s60, %s76
      %p78 = scmp.eq.s32.totalorder %s26, 0
      %p79 = por %p77, %p78
      %s80 = ssub.s32 %s20, %s27
      %p81 = scmp.eq.s32.totalorder %s80, 0
      %s83 = sadd.s32 %s82, 1
      %s84 = scalar_select %p81, %s82, %s83
      %p87 = pneg %p81
      %p88 = scmp.eq.s32.totalorder %s20, 3
      %p89 = por %p87, %p88
      %p90 = scmp.ne.s32.totalorder %s82, %s85
      %p91 = scmp.eq.s32.totalorder %s20, 0
      %p92 = por %p90, %p91
      %p93 = scmp.ne.s32.totalorder %s82, %s85
      %p94 = scmp.eq.s32.totalorder %s25, 3
      %p95 = por %p93, %p94
      %p96 = scmp.ne.s32.totalorder %s85, %s86
      %p97 = scmp.eq.s32.totalorder %s25, 0
      %p98 = por %p96, %p97
      %p99 = scmp.ne.s32.totalorder %s85, %s86
      %p100 = scmp.eq.s32.totalorder %s26, 3
      %p101 = por %p99, %p100
      %p103 = scmp.ne.s32.totalorder %s86, %s102
      %p104 = scmp.eq.s32.totalorder %s26, 0
      %p105 = por %p103, %p104
      %p106 = scmp.le.s32.totalorder 1, %s20
      %p107 = scmp.lt.s32.totalorder %s20, 5
      %p108 = pnand %p106, %p107
      %p109 = pneg %p108
      // Predicated region
      $region9: #{tpu_custom_call.1} parent=5 // pred_check
        _
      $region10: #{tpu_custom_call.1} parent=5 // pred_check_branch
        %111 = sbr.rel (%p108) target = $region12
      $region11: #{tpu_custom_call.1} parent=5 // pred_region
        %s112 = ssub.s32 %s20, 1
      $region12: #{tpu_custom_call.1} parent=5 // pred_fallthru
        _
      %p113 = scmp.lt.s32.totalorder %s20, 4
      // Predicated region
      $region13: #{tpu_custom_call.1} parent=5 // pred_check
        %p114 = pneg %p113
      $region14: #{tpu_custom_call.1} parent=5 // pred_check_branch
        %116 = sbr.rel (%p114) target = $region16
      $region15: #{tpu_custom_call.1} parent=5 // pred_region
        // Predicated region
        $region17: #{tpu_custom_call.1} parent=15 // pred_check
          %p117 = pneg %p40
        $region18: #{tpu_custom_call.1} parent=15 // pred_check_branch
          %119 = sbr.rel (%p117) target = $region20
        $region19: #{tpu_custom_call.1} parent=15 // pred_region
          %p120 = scmp.lt.s32.totalorder %s20, 3
          %s121 = scalar_select %p120, %s20, 3
          %s122 = smul.addr %s121, 8
          %s123 = scalar_lea.vmem %s1, %s122
        $region20: #{tpu_custom_call.1} parent=15 // pred_fallthru
          _
      $region16: #{tpu_custom_call.1} parent=5 // pred_fallthru
        _
      %p124 = scmp.le.s32.totalorder 1, %s20
      %p125 = scmp.lt.s32.totalorder %s20, 5
      %p126 = pnand %p124, %p125
      %p127 = pneg %p126
      // Predicated region
      $region21: #{tpu_custom_call.1} parent=5 // pred_check
        _
      $region22: #{tpu_custom_call.1} parent=5 // pred_check_branch
        %129 = sbr.rel (%p126) target = $region24
      $region23: #{tpu_custom_call.1} parent=5 // pred_region
        %s130 = ssub.s32 %s20, 1
        %p131 = scmp.lt.s32.totalorder %s25, 3
        %s132 = scalar_select %p131, %s25, 3
        %s133 = smul.addr %s132, 8
        %s134 = scalar_lea.vmem %s1, %s133
        %p135 = pneg %p46
        %p136 = pneg %p43
        %p137 = pneg %p72
        %p138 = pneg %p69
        %s139 = sand.u32 %s59, 1
        %s140 = scalar_lea.sflag [#allocation7], %s139
        %s141 = sand.u32 %s59, 1
        %s142 = smul.addr %s141, 8
        %s143 = scalar_lea.vmem [#allocation6], %s142
        %p144 = pneg %p98
        %p145 = pneg %p95
        %p146 = scmp.lt.s32.totalorder %s25, 3
        %s147 = scalar_select %p146, %s25, 3
        %s148 = smul.addr %s147, 8
        %s149 = scalar_lea.vmem %s4, %s148
        %p150 = scmp.lt.s32.totalorder %s25, 3
        %s151 = scalar_select %p150, %s25, 3
        %s152 = smul.addr %s151, 8
        %s153 = scalar_lea.vmem %s1, %s152
        %p154 = scmp.lt.s32.totalorder %s25, 3
        %s155 = scalar_select %p154, %s25, 3
        %s156 = smul.addr %s155, 8
        %s157 = scalar_lea.vmem %s4, %s156
        %s158 = smul.u32 %s25, 8
        %s159 = sld [smem:[#allocation5 + %s158]]
        %p160 = scmp.gt.s32.totalorder %s159, 0
        %s161 = scalar_select %p160, %s159, 0
        %p162 = scmp.lt.s32.totalorder %s161, 511
        %s163 = scalar_select %p162, %s161, 511
        %s164 = smul.addr %s163, 16
        %s165 = scalar_lea.hbm %s2, %s164
        // Predicated region
        $region25: #{tpu_custom_call.1} parent=23 // pred_check
          _
        $region26: #{tpu_custom_call.1} parent=23 // pred_check_branch
          %167 = sbr.rel target = $region28
        $region27: #{tpu_custom_call.1} parent=23 // pred_region
          %168 = sst [smem:[#allocation10]] [#allocation9]
          %169 = sst [smem:[#allocation11]] [#allocation8]
        $region28: #{tpu_custom_call.1} parent=23 // pred_fallthru
          _
        %171 = shalt.err (0)
        %s173 = sshll.u32 [#allocation2], 4
        %s174 = int_to_ptr.vmem [resolvable:$true] %s173
        %176 = dma.hbm_to_vmem [thread:$0]  %s165, 16, %s174, [#allocation3]
        %s177 = sadd.s32 %s158, 1
        %s178 = sld [smem:[#allocation5 + %s177]]
        %p179 = scmp.gt.s32.totalorder %s178, 0
        %s180 = scalar_select %p179, %s178, 0
        %p181 = scmp.lt.s32.totalorder %s180, 511
        %s182 = scalar_select %p181, %s180, 511
        %s183 = smul.addr %s182, 16
        %s184 = scalar_lea.hbm %s2, %s183
        %s185 = scalar_lea.vmem [#allocation2], 1
        %s186 = scalar_lea.sflag [#allocation3], 1
        // Predicated region
        $region29: #{tpu_custom_call.1} parent=23 // pred_check
          _
        $region30: #{tpu_custom_call.1} parent=23 // pred_check_branch
          %188 = sbr.rel target = $region32
        $region31: #{tpu_custom_call.1} parent=23 // pred_region
          %189 = sst [smem:[#allocation10]] [#allocation13]
          %190 = sst [smem:[#allocation11]] [#allocation12]
        $region32: #{tpu_custom_call.1} parent=23 // pred_fallthru
          _
        %192 = shalt.err (0)
        %s194 = sshll.u32 %s185, 4
        %s195 = int_to_ptr.vmem [resolvable:$true] %s194
        %197 = dma.hbm_to_vmem [thread:$0]  %s184, 16, %s195, %s186
        %s198 = sadd.s32 %s158, 2
        %s199 = sld [smem:[#allocation5 + %s198]]
        %p200 = scmp.gt.s32.totalorder %s199, 0
        %s201 = scalar_select %p200, %s199, 0
        %p202 = scmp.lt.s32.totalorder %s201, 511
        %s203 = scalar_select %p202, %s201, 511
        %s204 = smul.addr %s203, 16
        %s205 = scalar_lea.hbm %s2, %s204
        %s206 = scalar_lea.vmem [#allocation2], 2
        %s207 = scalar_lea.sflag [#allocation3], 2
        // Predicated region
        $region33: #{tpu_custom_call.1} parent=23 // pred_check
          _
        $region34: #{tpu_custom_call.1} parent=23 // pred_check_branch
          %209 = sbr.rel target = $region36
        $region35: #{tpu_custom_call.1} parent=23 // pred_region
          %210 = sst [smem:[#allocation10]] [#allocation15]
          %211 = sst [smem:[#allocation11]] [#allocation14]
        $region36: #{tpu_custom_call.1} parent=23 // pred_fallthru
          _
        %213 = shalt.err (0)
        %s215 = sshll.u32 %s206, 4
        %s216 = int_to_ptr.vmem [resolvable:$true] %s215
        %218 = dma.hbm_to_vmem [thread:$0]  %s205, 16, %s216, %s207
        %s219 = sadd.s32 %s158, 3
        %s220 = sld [smem:[#allocation5 + %s219]]
        %p221 = scmp.gt.s32.totalorder %s220, 0
        %s222 = scalar_select %p221, %s220, 0
        %p223 = scmp.lt.s32.totalorder %s222, 511
        %s224 = scalar_select %p223, %s222, 511
        %s225 = smul.addr %s224, 16
        %s226 = scalar_lea.hbm %s2, %s225
        %s227 = scalar_lea.vmem [#allocation2], 3
        %s228 = scalar_lea.sflag [#allocation3], 3
        // Predicated region
        $region37: #{tpu_custom_call.1} parent=23 // pred_check
          _
        $region38: #{tpu_custom_call.1} parent=23 // pred_check_branch
          %230 = sbr.rel target = $region40
        $region39: #{tpu_custom_call.1} parent=23 // pred_region
          %231 = sst [smem:[#allocation10]] [#allocation17]
          %232 = sst [smem:[#allocation11]] [#allocation16]
        $region40: #{tpu_custom_call.1} parent=23 // pred_fallthru
          _
        %234 = shalt.err (0)
        %s236 = sshll.u32 %s227, 4
        %s237 = int_to_ptr.vmem [resolvable:$true] %s236
        %239 = dma.hbm_to_vmem [thread:$0]  %s226, 16, %s237, %s228
        %s240 = sadd.s32 %s158, 4
        %s241 = sld [smem:[#allocation5 + %s240]]
        %p242 = scmp.gt.s32.totalorder %s241, 0
        %s243 = scalar_select %p242, %s241, 0
        %p244 = scmp.lt.s32.totalorder %s243, 511
        %s245 = scalar_select %p244, %s243, 511
        %s246 = smul.addr %s245, 16
        %s247 = scalar_lea.hbm %s2, %s246
        %s248 = scalar_lea.vmem [#allocation2], 4
        %s249 = scalar_lea.sflag [#allocation3], 4
        // Predicated region
        $region41: #{tpu_custom_call.1} parent=23 // pred_check
          _
        $region42: #{tpu_custom_call.1} parent=23 // pred_check_branch
          %251 = sbr.rel target = $region44
        $region43: #{tpu_custom_call.1} parent=23 // pred_region
          %252 = sst [smem:[#allocation10]] [#allocation19]
          %253 = sst [smem:[#allocation11]] [#allocation18]
        $region44: #{tpu_custom_call.1} parent=23 // pred_fallthru
          _
        %255 = shalt.err (0)
        %s257 = sshll.u32 %s248, 4
        %s258 = int_to_ptr.vmem [resolvable:$true] %s257
        %260 = dma.hbm_to_vmem [thread:$0]  %s247, 16, %s258, %s249
        %s261 = sadd.s32 %s158, 5
        %s262 = sld [smem:[#allocation5 + %s261]]
        %p263 = scmp.gt.s32.totalorder %s262, 0
        %s264 = scalar_select %p263, %s262, 0
        %p265 = scmp.lt.s32.totalorder %s264, 511
        %s266 = scalar_select %p265, %s264, 511
        %s267 = smul.addr %s266, 16
        %s268 = scalar_lea.hbm %s2, %s267
        %s269 = scalar_lea.vmem [#allocation2], 5
        %s270 = scalar_lea.sflag [#allocation3], 5
        // Predicated region
        $region45: #{tpu_custom_call.1} parent=23 // pred_check
          _
        $region46: #{tpu_custom_call.1} parent=23 // pred_check_branch
          %272 = sbr.rel target = $region48
        $region47: #{tpu_custom_call.1} parent=23 // pred_region
          %273 = sst [smem:[#allocation10]] [#allocation21]
          %274 = sst [smem:[#allocation11]] [#allocation20]
        $region48: #{tpu_custom_call.1} parent=23 // pred_fallthru
          _
        %276 = shalt.err (0)
        %s278 = sshll.u32 %s269, 4
        %s279 = int_to_ptr.vmem [resolvable:$true] %s278
        %281 = dma.hbm_to_vmem [thread:$0]  %s268, 16, %s279, %s270
        %s282 = sadd.s32 %s158, 6
        %s283 = sld [smem:[#allocation5 + %s282]]
        %p284 = scmp.gt.s32.totalorder %s283, 0
        %s285 = scalar_select %p284, %s283, 0
        %p286 = scmp.lt.s32.totalorder %s285, 511
        %s287 = scalar_select %p286, %s285, 511
        %s288 = smul.addr %s287, 16
        %s289 = scalar_lea.hbm %s2, %s288
        %s290 = scalar_lea.vmem [#allocation2], 6
        %s291 = scalar_lea.sflag [#allocation3], 6
        // Predicated region
        $region49: #{tpu_custom_call.1} parent=23 // pred_check
          _
        $region50: #{tpu_custom_call.1} parent=23 // pred_check_branch
          %293 = sbr.rel target = $region52
        $region51: #{tpu_custom_call.1} parent=23 // pred_region
          %294 = sst [smem:[#allocation10]] [#allocation23]
          %295 = sst [smem:[#allocation11]] [#allocation22]
        $region52: #{tpu_custom_call.1} parent=23 // pred_fallthru
          _
        %297 = shalt.err (0)
        %s299 = sshll.u32 %s290, 4
        %s300 = int_to_ptr.vmem [resolvable:$true] %s299
        %302 = dma.hbm_to_vmem [thread:$0]  %s289, 16, %s300, %s291
        %s303 = sadd.s32 %s158, 7
        %s304 = sld [smem:[#allocation5 + %s303]]
        %p305 = scmp.gt.s32.totalorder %s304, 0
        %s306 = scalar_select %p305, %s304, 0
        %p307 = scmp.lt.s32.totalorder %s306, 511
        %s308 = scalar_select %p307, %s306, 511
        %s309 = smul.addr %s308, 16
        %s310 = scalar_lea.hbm %s2, %s309
        %s311 = scalar_lea.vmem [#allocation2], 7
        %s312 = scalar_lea.sflag [#allocation3], 7
        // Predicated region
        $region53: #{tpu_custom_call.1} parent=23 // pred_check
          _
        $region54: #{tpu_custom_call.1} parent=23 // pred_check_branch
          %314 = sbr.rel target = $region56
        $region55: #{tpu_custom_call.1} parent=23 // pred_region
          %315 = sst [smem:[#allocation10]] [#allocation25]
          %316 = sst [smem:[#allocation11]] [#allocation24]
        $region56: #{tpu_custom_call.1} parent=23 // pred_fallthru
          _
        %318 = shalt.err (0)
        %s320 = sshll.u32 %s311, 4
        %s321 = int_to_ptr.vmem [resolvable:$true] %s320
        %323 = dma.hbm_to_vmem [thread:$0]  %s310, 16, %s321, %s312
        %v324 = vld [vmem:[%s153] sm:$0xff]
        %vm325 = vcmp.eq.s32.totalorder %v324, 0
        %v326 = vsel %vm325, 1, 0
        %v327 = vcvt.s32.f32 %v326
        %vm328 = vcmask 7168
        %329 = vst.msk [vmem:[%s157] sm:$0xff] %vm328, %v327
        %s330 = smul.u32 1, 1
        %s331 = sshll.u32 %s330, 4
        %332 = dma.done [#allocation3], %s331
        %s333 = sshll.u32 %s330, 4
        %334 = dma.done %s186, %s333
        %s335 = sshll.u32 %s330, 4
        %336 = dma.done %s207, %s335
        %s337 = sshll.u32 %s330, 4
        %338 = dma.done %s228, %s337
        %s339 = sshll.u32 %s330, 4
        %340 = dma.done %s249, %s339
        %s341 = sshll.u32 %s330, 4
        %342 = dma.done %s270, %s341
        %s343 = sshll.u32 %s330, 4
        %344 = dma.done %s291, %s343
        %s345 = sshll.u32 %s330, 4
        %346 = dma.done %s312, %s345
        %v347 = vld [vmem:[#allocation2] sm:$0xff]
        %348 = vst [vmem:[%s143] sm:$0xff] %v347
        %s349 = sand.u32 %s59, 1
        %s350 = scalar_lea.sflag [#allocation7], %s349
        %s351 = sand.u32 %s59, 1
        %s352 = smul.addr %s351, 8
        %s353 = scalar_lea.vmem [#allocation6], %s352
        %p354 = scmp.lt.s32.totalorder %s25, 3
        %s355 = scalar_select %p354, %s25, 3
        %s356 = smul.addr %s355, 8
        %s357 = scalar_lea.vmem %s4, %s356
        // Predicated region
        $region57: #{tpu_custom_call.1} parent=23 // pred_check
          %p358 = pneg %p69
        $region58: #{tpu_custom_call.1} parent=23 // pred_check_branch
          %360 = sbr.rel (%p358) target = $region60
        $region59: #{tpu_custom_call.1} parent=23 // pred_region
          %s362 = ssub.s32 128, 128
          %363 = vsyncadd %s350, %s362
          %s364 = smul.addr %s25, 128
          %s365 = scalar_lea.hbm %s3, %s364
          %s367 = sshll.u32 %s353, 4
          %s368 = int_to_ptr.vmem [resolvable:$true] %s367
          %370 = dma.vmem_to_hbm [thread:$0]  %s368, 128, %s365, %s350
        $region60: #{tpu_custom_call.1} parent=23 // pred_fallthru
          _
        // Predicated region
        $region61: #{tpu_custom_call.1} parent=23 // pred_check
          %p371 = pneg %p95
        $region62: #{tpu_custom_call.1} parent=23 // pred_check_branch
          %373 = sbr.rel (%p371) target = $region64
        $region63: #{tpu_custom_call.1} parent=23 // pred_region
          _
        $region64: #{tpu_custom_call.1} parent=23 // pred_fallthru
          _
      $region24: #{tpu_custom_call.1} parent=5 // pred_fallthru
        _
      %p374 = scmp.le.s32.totalorder 2, %s20
      // Predicated region
      $region65: #{tpu_custom_call.1} parent=5 // pred_check
        %p375 = pneg %p374
      $region66: #{tpu_custom_call.1} parent=5 // pred_check_branch
        %377 = sbr.rel (%p375) target = $region68
      $region67: #{tpu_custom_call.1} parent=5 // pred_region
        %s378 = ssub.s32 %s20, 2
        // Predicated region
        $region69: #{tpu_custom_call.1} parent=67 // pred_check
          %p379 = pneg %p75
        $region70: #{tpu_custom_call.1} parent=67 // pred_check_branch
          %381 = sbr.rel (%p379) target = $region72
        $region71: #{tpu_custom_call.1} parent=67 // pred_region
          %s382 = sand.u32 %s60, 1
          %s383 = scalar_lea.sflag [#allocation7], %s382
          %s384 = sand.u32 %s60, 1
          %s385 = smul.addr %s384, 8
          %s386 = scalar_lea.vmem [#allocation6], %s385
          %387 = dma.done %s383, 128
        $region72: #{tpu_custom_call.1} parent=67 // pred_fallthru
          _
        // Predicated region
        $region73: #{tpu_custom_call.1} parent=67 // pred_check
          %p388 = pneg %p101
        $region74: #{tpu_custom_call.1} parent=67 // pred_check_branch
          %390 = sbr.rel (%p388) target = $region76
        $region75: #{tpu_custom_call.1} parent=67 // pred_region
          %p391 = scmp.lt.s32.totalorder %s26, 3
          %s392 = scalar_select %p391, %s26, 3
          %s393 = smul.addr %s392, 8
          %s394 = scalar_lea.vmem %s4, %s393
        $region76: #{tpu_custom_call.1} parent=67 // pred_fallthru
          _
      $region68: #{tpu_custom_call.1} parent=5 // pred_fallthru
        _
    $region6: #{tpu_custom_call.1} parent=1 // loop_footer
      %s24 = sadd.s32 1, %s20
    $region7: #{tpu_custom_call.1} parent=1 // loop_footer_branch
      %19 = sbr.rel target = $region3
    $region8: #{tpu_custom_call.1} parent=1 // loop_exit
      _
    %395 = vsyncpa [#allocation7], 1
    %s396 = scalar_lea.sflag [#allocation7], 1
    %397 = vsyncpa %s396, 1
  %398 = vsyncmov [#allocation3]
  %s399 = vpop.sfrf %398
  %p400 = scmp.eq.s32.totalorder %s399, 0
  %p401 = pneg %p400
  %403 = shalt.err (%p401)
  %s404 = scalar_lea.sflag [#allocation3], 1
  %405 = vsyncmov %s404
  %s406 = vpop.sfrf %405
  %p407 = scmp.eq.s32.totalorder %s406, 0
  %p408 = pneg %p407
  %410 = shalt.err (%p408)
  %s411 = scalar_lea.sflag [#allocation3], 2
  %412 = vsyncmov %s411
  %s413 = vpop.sfrf %412
  %p414 = scmp.eq.s32.totalorder %s413, 0
  %p415 = pneg %p414
  %417 = shalt.err (%p415)
  %s418 = scalar_lea.sflag [#allocation3], 3
  %419 = vsyncmov %s418
  %s420 = vpop.sfrf %419
  %p421 = scmp.eq.s32.totalorder %s420, 0
  %p422 = pneg %p421
  %424 = shalt.err (%p422)
  %s425 = scalar_lea.sflag [#allocation3], 4
  %426 = vsyncmov %s425
  %s427 = vpop.sfrf %426
  %p428 = scmp.eq.s32.totalorder %s427, 0
  %p429 = pneg %p428
  %431 = shalt.err (%p429)
  %s432 = scalar_lea.sflag [#allocation3], 5
  %433 = vsyncmov %s432
  %s434 = vpop.sfrf %433
  %p435 = scmp.eq.s32.totalorder %s434, 0
  %p436 = pneg %p435
  %438 = shalt.err (%p436)
  %s439 = scalar_lea.sflag [#allocation3], 6
  %440 = vsyncmov %s439
  %s441 = vpop.sfrf %440
  %p442 = scmp.eq.s32.totalorder %s441, 0
  %p443 = pneg %p442
  %445 = shalt.err (%p443)
  %s446 = scalar_lea.sflag [#allocation3], 7
  %447 = vsyncmov %s446
  %s448 = vpop.sfrf %447
  %p449 = scmp.eq.s32.totalorder %s448, 0
  %p450 = pneg %p449
  %452 = shalt.err (%p450)

</llo_original>
